<compile_context>
chip_gen: v6e
topology: v6e:2x2x1
jax: 0.10.0
libtpu: 0.0.40
codegen_flags: <defaults>
</compile_context>

<pallas_src>
import jax
import jax.numpy as jnp
from jax.experimental import pallas as pl
from jax.experimental.pallas import tpu as pltpu

LANES = 128
DEFAULT_TILE_ROWS = 2048      # 2048 x 128 f32 = 1 MiB per buffer
MIN_ROWS_PER_STEP = 256       # don't split the grid below ~128 KiB of work/step
MIN_PALLAS_BATCH = 8 * LANES  # below this, the fused XLA path is strictly faster


def _cdiv(a: int, b: int) -> int:
    return -(-a // b)


def _round_up(a: int, m: int) -> int:
    return _cdiv(a, m) * m


def _choose_tile(rows: int, tile_rows: int) -> tuple[int, int]:
    """Pick (tile_rows_per_block, grid_steps) for a (rows, 128) slab."""
    nsteps = _cdiv(rows, tile_rows)
    # Prefer an even number (>= 2) of balanced steps so ("parallel",) can shard
    # across both v7x TensorCores -- but only when each step keeps real work.
    if nsteps == 1:
        if rows >= 2 * MIN_ROWS_PER_STEP:
            nsteps = 2
    elif nsteps % 2 == 1 and rows >= (nsteps + 1) * MIN_ROWS_PER_STEP:
        nsteps += 1
    if nsteps == 1:
        return rows, 1                              # block == full array (always legal)
    tile = _round_up(_cdiv(rows, nsteps), 8)        # balanced, (8,128)-aligned blocks
    return tile, _cdiv(rows, tile)


def make_taylor_kernel(x_0: float, n: int):
    """Fused kernel: d = x - x0, then Horner evaluation of sum_k w[k] d^k + b."""
    x0 = float(x_0)

    def kernel(w_ref, b_ref, x_ref, o_ref):
        # Grid-invariant SMEM operands: block index never changes across steps,
        # so the SMEM copy happens once; these are cheap scalar-slot reads.
        w = [w_ref[k] for k in range(n)]
        b = b_ref[0]

        d = x_ref[...] - x0                          # (tile, 128) f32, VPU

        # Horner: sum_{k=1..n} w[k-1] * d^k = d * (w0 + d*(w1 + d*(...)))
        # -> 1 vmul + 1 vadd per term, one live vreg.
        acc = w[n - 1]
        for k in range(n - 2, -1, -1):
            acc = acc * d + w[k]
        o_ref[...] = (d * acc + b).astype(o_ref.dtype)   # last_layer bias + cast

    return kernel


def _taylor_pallas_2d(x2d, w_last, b_last, *, x_0: float, n: int, tile: int, grid: int):
    rows, lanes = x2d.shape
    total = rows * lanes
    return pl.pallas_call(
        make_taylor_kernel(x_0, n),
        out_shape=jax.ShapeDtypeStruct((rows, lanes), x2d.dtype),
        grid_spec=pltpu.PrefetchScalarGridSpec(
            num_scalar_prefetch=0,
            grid=(grid,),
            in_specs=[
                pl.BlockSpec(memory_space=pltpu.SMEM),           # last_layer weight (n,)
                pl.BlockSpec(memory_space=pltpu.SMEM),           # last_layer bias   (1,)
                pl.BlockSpec((tile, lanes), lambda i: (i, 0)),   # x tile (VMEM, pipelined)
            ],
            out_specs=pl.BlockSpec((tile, lanes), lambda i: (i, 0)),
        ),
        compiler_params=pltpu.CompilerParams(
            dimension_semantics=("parallel",),                   # shard rows across TCs
        ),
        cost_estimate=pl.CostEstimate(
            flops=2 * n * total,                                 # Horner: ~2 flops/term/elem
            transcendentals=0,
            bytes_accessed=2 * 4 * total,                        # read x + write y (f32)
        ),
    )(w_last, b_last, x2d)


def taylor_network(x, w_last, b_last, *, x_0: float, n: int,
                   tile_rows: int = DEFAULT_TILE_ROWS,
                   min_pallas_batch: int = MIN_PALLAS_BATCH):
    """x: (B, 1), w_last: (n,), b_last: (1,) -> (B, 1)."""
    B = x.shape[0]
    out_dtype = x.dtype

    if B < min_pallas_batch:
        # Tiny batch: pallas_call launch + step overhead dominates; fused XLA wins.
        return taylor_reference(x, w_last, b_last, x_0=x_0, n=n)

    # Kernel computes in f32 (module is f32); cast non-f32 inputs at the boundary.
    xf = x if x.dtype == jnp.float32 else x.astype(jnp.float32)
    wf = w_last.astype(jnp.float32)
    bf = b_last.astype(jnp.float32)
    x_flat = xf.reshape(-1)

    if B % LANES == 0:
        # Zero-copy fast path: reshape in / reshape out, no extra HBM passes.
        rows = B // LANES
        x2d = x_flat.reshape(rows, LANES)
        tile, grid = _choose_tile(rows, tile_rows)
        out2d = _taylor_pallas_2d(x2d, wf, bf, x_0=x_0, n=n, tile=tile, grid=grid)
        return out2d.reshape(B, 1).astype(out_dtype)

    # General path: pad only to the next multiple of 8*128 (<= 1023 elements),
    # never to a tile multiple; the ragged final grid block is masked by Pallas.
    # TODO(synk): for B % 128 != 0 the pad + [:B] slice are two extra HBM passes;
    # a <128-element XLA tail epilogue would remove them at the cost of a concat.
    rows = _round_up(_cdiv(B, LANES), 8)
    x2d = jnp.pad(x_flat, (0, rows * LANES - B)).reshape(rows, LANES)
    tile, grid = _choose_tile(rows, tile_rows)
    out2d = _taylor_pallas_2d(x2d, wf, bf, x_0=x_0, n=n, tile=tile, grid=grid)
    return out2d.reshape(-1)[:B].reshape(B, 1).astype(out_dtype)


def taylor_reference(x, w_last, b_last, *, x_0: float, n: int):
    """Plain-JAX reference mirroring the PyTorch forward exactly."""
    z = x - x_0                                      # (B, 1)
    z = jnp.broadcast_to(z, (x.shape[0], n))         # first_layer, weight = 1.0
    exps = jnp.arange(1, n + 1, dtype=x.dtype)       # PowerLayer exponents
    z = z ** exps                                    # (B, n)
    return z @ w_last.reshape(n, 1) + b_last         # last_layer


if __name__ == "__main__":
    key = jax.random.PRNGKey(0)
    k_x, k_w, k_b, k_x2, k_x3 = jax.random.split(key, 5)

    n = 6
    x_0 = 0.5

    # Deterministic parameter init (mimics nn.Linear default: U(-1/sqrt(n), 1/sqrt(n)))
    bound = 1.0 / (n ** 0.5)
    w_last = jax.random.uniform(k_w, (n,), dtype=jnp.float32, minval=-bound, maxval=bound)
    b_last = jax.random.uniform(k_b, (1,), dtype=jnp.float32, minval=-bound, maxval=bound)

    # 1) Tiny batch consistent with the module (scalar inputs): takes the fused
    #    XLA fallback path (Pallas launch overhead would dominate at B=8).
    x_small = jax.random.normal(k_x, (8, 1), dtype=jnp.float32)
    out_small = jax.block_until_ready(
        taylor_network(x_small, w_last, b_last, x_0=x_0, n=n))
    ref_small = taylor_reference(x_small, w_last, b_last, x_0=x_0, n=n)
    assert out_small.shape == (8, 1) and out_small.dtype == jnp.float32
    assert jnp.allclose(out_small, ref_small, atol=1e-4, rtol=1e-5)

    # 2) Lane-aligned batch: exercises the zero-copy Pallas fast path (B % 128 == 0,
    #    single full-array block).
    B1 = 4096
    x1 = jax.random.normal(k_x2, (B1, 1), dtype=jnp.float32)
    out1 = jax.block_until_ready(taylor_network(x1, w_last, b_last, x_0=x_0, n=n))
    ref1 = taylor_reference(x1, w_last, b_last, x_0=x_0, n=n)
    assert out1.shape == (B1, 1) and out1.dtype == jnp.float32
    assert jnp.allclose(out1, ref1, atol=1e-3, rtol=1e-4)

    # 3) Non-aligned batch: exercises the minimally-padded path, the balanced
    #    2-step grid (megacore split) and the masked ragged final block.
    B2 = 66_000
    x2 = jax.random.normal(k_x3, (B2, 1), dtype=jnp.float32)
    out2 = jax.block_until_ready(taylor_network(x2, w_last, b_last, x_0=x_0, n=n))
    ref2 = taylor_reference(x2, w_last, b_last, x_0=x_0, n=n)
    assert out2.shape == (B2, 1) and out2.dtype == jnp.float32
    assert jnp.allclose(out2, ref2, atol=1e-3, rtol=1e-4)

    print("KERNEL_OK")
</pallas_src>

<mosaic_0001>
module attributes {stable_mosaic.version = 11 : i64} {
  func.func @kernel(%arg0: i32, %arg1: memref<6xf32, #tpu.memory_space<smem>>, %arg2: memref<1xf32, #tpu.memory_space<smem>>, %arg3: memref<32x128xf32, #tpu.memory_space<vmem>>, %arg4: memref<32x128xf32, #tpu.memory_space<vmem>>) attributes {dimension_semantics = [#tpu.dimension_semantics<parallel>], iteration_bounds = array<i64: 1>, scalar_prefetch = 0 : i64, scratch_operands = 0 : i64, tpu.core_type = #tpu.core_type<tc>, window_params = [{transform_indices = @transform_0, window_bounds = array<i64: 6>}, {transform_indices = @transform_1, window_bounds = array<i64: 1>}, {transform_indices = @transform_2, window_bounds = array<i64: 32, 128>}, {transform_indices = @transform_3, window_bounds = array<i64: 32, 128>}]} {
    %c0 = arith.constant 0 : index
    %0 = memref.load %arg1[%c0] : memref<6xf32, #tpu.memory_space<smem>>
    %c1 = arith.constant 1 : index
    %1 = memref.load %arg1[%c1] : memref<6xf32, #tpu.memory_space<smem>>
    %c2 = arith.constant 2 : index
    %2 = memref.load %arg1[%c2] : memref<6xf32, #tpu.memory_space<smem>>
    %c3 = arith.constant 3 : index
    %3 = memref.load %arg1[%c3] : memref<6xf32, #tpu.memory_space<smem>>
    %c4 = arith.constant 4 : index
    %4 = memref.load %arg1[%c4] : memref<6xf32, #tpu.memory_space<smem>>
    %c5 = arith.constant 5 : index
    %5 = memref.load %arg1[%c5] : memref<6xf32, #tpu.memory_space<smem>>
    %c0_0 = arith.constant 0 : index
    %6 = memref.load %arg2[%c0_0] : memref<1xf32, #tpu.memory_space<smem>>
    %c0_1 = arith.constant 0 : index
    %c0_2 = arith.constant 0 : index
    %7 = vector.load %arg3[%c0_1, %c0_2] : memref<32x128xf32, #tpu.memory_space<vmem>>, vector<32x128xf32>
    %cst = arith.constant 5.000000e-01 : f32
    %8 = vector.broadcast %cst : f32 to vector<32x128xf32>
    %9 = arith.subf %7, %8 : vector<32x128xf32>
    %10 = vector.broadcast %5 : f32 to vector<32x128xf32>
    %11 = arith.mulf %10, %9 : vector<32x128xf32>
    %12 = vector.broadcast %4 : f32 to vector<32x128xf32>
    %13 = arith.addf %11, %12 : vector<32x128xf32>
    %14 = arith.mulf %13, %9 : vector<32x128xf32>
    %15 = vector.broadcast %3 : f32 to vector<32x128xf32>
    %16 = arith.addf %14, %15 : vector<32x128xf32>
    %17 = arith.mulf %16, %9 : vector<32x128xf32>
    %18 = vector.broadcast %2 : f32 to vector<32x128xf32>
    %19 = arith.addf %17, %18 : vector<32x128xf32>
    %20 = arith.mulf %19, %9 : vector<32x128xf32>
    %21 = vector.broadcast %1 : f32 to vector<32x128xf32>
    %22 = arith.addf %20, %21 : vector<32x128xf32>
    %23 = arith.mulf %22, %9 : vector<32x128xf32>
    %24 = vector.broadcast %0 : f32 to vector<32x128xf32>
    %25 = arith.addf %23, %24 : vector<32x128xf32>
    %26 = arith.mulf %9, %25 : vector<32x128xf32>
    %27 = vector.broadcast %6 : f32 to vector<32x128xf32>
    %28 = arith.addf %26, %27 : vector<32x128xf32>
    %c0_3 = arith.constant 0 : index
    %c0_4 = arith.constant 0 : index
    %29 = vector.load %arg4[%c0_3, %c0_4] : memref<32x128xf32, #tpu.memory_space<vmem>>, vector<32x128xf32>
    tpu.vector_store %arg4[%c0_3, %c0_4], %28 {strides = array<i32>} : memref<32x128xf32, #tpu.memory_space<vmem>>, vector<32x128xf32>,
    return
  }
  func.func @transform_0(%arg0: i32) -> i32 {
    %c0_i32 = arith.constant 0 : i32
    %c0_i32_0 = arith.constant 0 : i32
    return %c0_i32 : i32
  }
  func.func @transform_1(%arg0: i32) -> i32 {
    %c0_i32 = arith.constant 0 : i32
    %c0_i32_0 = arith.constant 0 : i32
    return %c0_i32 : i32
  }
  func.func @transform_2(%arg0: i32) -> (i32, i32) {
    %c0_i32 = arith.constant 0 : i32
    %c0_i32_0 = arith.constant 0 : i32
    return %arg0, %c0_i32 : i32, i32
  }
  func.func @transform_3(%arg0: i32) -> (i32, i32) {
    %c0_i32 = arith.constant 0 : i32
    %c0_i32_0 = arith.constant 0 : i32
    return %arg0, %c0_i32 : i32, i32
  }
}

</mosaic_0001>

<llo_original>
// kernel: tpu_custom_call.1
$region0: #{tpu_custom_call.1}
  #allocation0 [shape = 'u32[]', space=smem, size = 0x4, offset = 0x4, fixed_abs, tag = 'smem constant byte address 0x4 - core index']
  #allocation1 [shape = 'u32[144,128]{1,0:T(1,128)}', space=vmem, size = 0x12000, scoped, tag = 'internal scratch']
  #allocation2 [shape = 'f32[1]{0:T(128)S(6)}', space=smem, size = 0x200, scoped, tag = 'scoped memory for tpu_custom_call.1']
  %s0 = inlined_call_operand.vmem [shape: f32[6], index: 0, kind: input, shape index: {}]
  %s1 = inlined_call_operand.<no memory space> [shape: f32[1], index: 1, kind: input, shape index: {}]
  %s2 = inlined_call_operand.hbm [shape: f32[32,128], index: 2, kind: input, shape index: {}]
  %s3 = inlined_call_operand.hbm [shape: f32[32,128], index: 3, kind: output, shape index: {}]
  %s4 = sld [smem:[#allocation0]]
  $region30: #{tpu_custom_call.1} parent=0
    _
  %s6 = ssub.s32 1, %s4
  %s7 = scalar_select 0, %s6, %s4
  %8 = sst [smem:[#allocation2]] %s1
  $region1: #{tpu_custom_call.1} parent=0
    #allocation3 [shape = 'u8[512]{0}', space=smem, size = 0x200, scoped, tag = 'input window, operand 0, single buffered']
    #allocation4 [shape = 's32[1]{0}', space=sflag, size = 0x4, scoped, tag = 'scoped memory for tpu_custom_call.1']
    #allocation5 [shape = 's32[1]{0}', space=sflag, size = 0x4, scoped, tag = 'scoped memory for tpu_custom_call.1']
    #allocation6 [shape = 's32[1]{0}', space=sflag, size = 0x4, scoped, tag = 'scoped memory for tpu_custom_call.1']
    #allocation7 [shape = 'u8[16384]{0}', space=vmem, size = 0x4000, scoped, tag = 'input window, operand 2, single buffered']
    #allocation8 [shape = 'u8[16384]{0}', space=vmem, size = 0x4000, scoped, tag = 'output window, operand 0, single buffered']
    %9 = vsyncpa [#allocation6], 0
    %10 = vsyncpa [#allocation4], 0
    %11 = vsyncpa [#allocation5], 0
    // Predicated region
    $region2: #{tpu_custom_call.1} parent=1 // pred_check
      _
    $region3: #{tpu_custom_call.1} parent=1 // pred_check_branch
      %13 = sbr.rel (0) target = $region5
    $region4: #{tpu_custom_call.1} parent=1 // pred_region
      %s15 = ssub.s32 16, 16
      %16 = vsyncadd [#allocation6], %s15
      %s18 = sshll.u32 %s0, 4
      %s19 = int_to_ptr.vmem [resolvable:$true] %s18
      %21 = dma.vmem_to_smem %s19, 16, [#allocation3], [#allocation6]
    $region5: #{tpu_custom_call.1} parent=1 // pred_fallthru
      _
    // Predicated region
    $region6: #{tpu_custom_call.1} parent=1 // pred_check
      _
    $region7: #{tpu_custom_call.1} parent=1 // pred_check_branch
      %23 = sbr.rel (0) target = $region9
    $region8: #{tpu_custom_call.1} parent=1 // pred_region
      _
    $region9: #{tpu_custom_call.1} parent=1 // pred_fallthru
      _
    // Predicated region
    $region10: #{tpu_custom_call.1} parent=1 // pred_check
      _
    $region11: #{tpu_custom_call.1} parent=1 // pred_check_branch
      %25 = sbr.rel (0) target = $region13
    $region12: #{tpu_custom_call.1} parent=1 // pred_region
      %s27 = ssub.s32 512, 512
      %28 = vsyncadd [#allocation4], %s27
      %s29 = sshll.u32 [#allocation7], 4
      %s30 = int_to_ptr.vmem [resolvable:$true] %s29
      %35 = dma.hbm_to_vmem [thread:$0]  %s2, 512, %s30, [#allocation4], 128, 128, 8
    $region13: #{tpu_custom_call.1} parent=1 // pred_fallthru
      _
    // Predicated region
    $region14: #{tpu_custom_call.1} parent=1 // pred_check
      _
    $region15: #{tpu_custom_call.1} parent=1 // pred_check_branch
      %37 = sbr.rel (0) target = $region17
    $region16: #{tpu_custom_call.1} parent=1 // pred_region
      %38 = dma.done [#allocation6], 16
    $region17: #{tpu_custom_call.1} parent=1 // pred_fallthru
      _
    // Predicated region
    $region18: #{tpu_custom_call.1} parent=1 // pred_check
      _
    $region19: #{tpu_custom_call.1} parent=1 // pred_check_branch
      %40 = sbr.rel (0) target = $region21
    $region20: #{tpu_custom_call.1} parent=1 // pred_region
      %41 = dma.done [#allocation4], 512
    $region21: #{tpu_custom_call.1} parent=1 // pred_fallthru
      _
    %42 = sfence
    %s43 = sld [smem:[#allocation3]]
    %s44 = sld [smem:[#allocation3 + $0x1]]
    %s45 = sld [smem:[#allocation3 + $0x2]]
    %s46 = sld [smem:[#allocation3 + $0x3]]
    %s47 = sld [smem:[#allocation3 + $0x4]]
    %s48 = sld [smem:[#allocation3 + $0x5]]
    %s49 = sld [smem:[#allocation2]]
    %v50 = vld [vmem:[#allocation7] sm:$0xff]
    %v51 = vld [vmem:[#allocation7 + $0x8] sm:$0xff]
    %v52 = vld [vmem:[#allocation7 + $0x10] sm:$0xff]
    %v53 = vld [vmem:[#allocation7 + $0x18] sm:$0xff]
    %v54 = vsub.f32 %v50, 0.5
    %v55 = vsub.f32 %v51, 0.5
    %v56 = vsub.f32 %v52, 0.5
    %v57 = vsub.f32 %v53, 0.5
    %v58 = vstv %s48
    %v59 = vmul.f32 %v58, %v54
    %v60 = vmul.f32 %v58, %v55
    %v61 = vmul.f32 %v58, %v56
    %v62 = vmul.f32 %v58, %v57
    %v63 = vstv %s47
    %v64 = vadd.f32 %v59, %v63
    %v65 = vadd.f32 %v60, %v63
    %v66 = vadd.f32 %v61, %v63
    %v67 = vadd.f32 %v62, %v63
    %v68 = vmul.f32 %v64, %v54
    %v69 = vmul.f32 %v65, %v55
    %v70 = vmul.f32 %v66, %v56
    %v71 = vmul.f32 %v67, %v57
    %v72 = vstv %s46
    %v73 = vadd.f32 %v68, %v72
    %v74 = vadd.f32 %v69, %v72
    %v75 = vadd.f32 %v70, %v72
    %v76 = vadd.f32 %v71, %v72
    %v77 = vmul.f32 %v73, %v54
    %v78 = vmul.f32 %v74, %v55
    %v79 = vmul.f32 %v75, %v56
    %v80 = vmul.f32 %v76, %v57
    %v81 = vstv %s45
    %v82 = vadd.f32 %v77, %v81
    %v83 = vadd.f32 %v78, %v81
    %v84 = vadd.f32 %v79, %v81
    %v85 = vadd.f32 %v80, %v81
    %v86 = vmul.f32 %v82, %v54
    %v87 = vmul.f32 %v83, %v55
    %v88 = vmul.f32 %v84, %v56
    %v89 = vmul.f32 %v85, %v57
    %v90 = vstv %s44
    %v91 = vadd.f32 %v86, %v90
    %v92 = vadd.f32 %v87, %v90
    %v93 = vadd.f32 %v88, %v90
    %v94 = vadd.f32 %v89, %v90
    %v95 = vmul.f32 %v91, %v54
    %v96 = vmul.f32 %v92, %v55
    %v97 = vmul.f32 %v93, %v56
    %v98 = vmul.f32 %v94, %v57
    %v99 = vstv %s43
    %v100 = vadd.f32 %v95, %v99
    %v101 = vadd.f32 %v96, %v99
    %v102 = vadd.f32 %v97, %v99
    %v103 = vadd.f32 %v98, %v99
    %v104 = vmul.f32 %v54, %v100
    %v105 = vmul.f32 %v55, %v101
    %v106 = vmul.f32 %v56, %v102
    %v107 = vmul.f32 %v57, %v103
    %v108 = vstv %s49
    %v109 = vadd.f32 %v104, %v108
    %v110 = vadd.f32 %v105, %v108
    %v111 = vadd.f32 %v106, %v108
    %v112 = vadd.f32 %v107, %v108
    %113 = vst [vmem:[#allocation8] sm:$0xff] %v109
    %114 = vst [vmem:[#allocation8 + $0x8] sm:$0xff] %v110
    %115 = vst [vmem:[#allocation8 + $0x10] sm:$0xff] %v111
    %116 = vst [vmem:[#allocation8 + $0x18] sm:$0xff] %v112
    // Predicated region
    $region22: #{tpu_custom_call.1} parent=1 // pred_check
      _
    $region23: #{tpu_custom_call.1} parent=1 // pred_check_branch
      %118 = sbr.rel (0) target = $region25
    $region24: #{tpu_custom_call.1} parent=1 // pred_region
      %s120 = ssub.s32 512, 512
      %121 = vsyncadd [#allocation5], %s120
      %s122 = sshll.u32 [#allocation8], 4
      %s123 = int_to_ptr.vmem [resolvable:$true] %s122
      %128 = dma.vmem_to_hbm [thread:$0]  %s123, 512, %s3, [#allocation5], 128, 128, 8
    $region25: #{tpu_custom_call.1} parent=1 // pred_fallthru
      _
    // Predicated region
    $region26: #{tpu_custom_call.1} parent=1 // pred_check
      _
    $region27: #{tpu_custom_call.1} parent=1 // pred_check_branch
      %130 = sbr.rel (0) target = $region29
    $region28: #{tpu_custom_call.1} parent=1 // pred_region
      %131 = dma.done [#allocation5], 512
    $region29: #{tpu_custom_call.1} parent=1 // pred_fallthru
      _
    %132 = vsyncpa [#allocation4], 1
    %133 = vsyncpa [#allocation5], 1
    %134 = vsyncpa [#allocation6], 1

</llo_original>
